<compile_context>
chip_gen: v7x
topology: tpu7x:2x2x1
jax: 0.10.0
libtpu: 0.0.40
codegen_flags: <defaults>
</compile_context>

<pallas_src>
import functools
import math

import jax
import jax.numpy as jnp
from jax.experimental import pallas as pl
from jax.experimental.pallas import tpu as pltpu

_LANES = 128


def _pos_embedding_kernel(inv_freq_ref, odd_ref, posoff_ref, o_ref, *, pos_per_row):
    # o_ref: (ts, L) tile of the (possibly lane-packed) table.
    ts, lanes = o_ref.shape
    row0 = (pl.program_id(0) * ts).astype(jnp.float32)
    # Row ramp in float (single int->f32 convert per vreg; row0 added in float
    # so there is no integer add on the critical path of a store-bound kernel).
    row = jax.lax.broadcasted_iota(jnp.int32, (ts, lanes), 0).astype(jnp.float32) + row0
    # Position of each element: slab-row index * positions-per-row + lane offset.
    pos = row * jnp.float32(pos_per_row) + posoff_ref[...]
    angle = pos * inv_freq_ref[...]
    # True cos on odd logical columns (avoids sin(x + pi/2) rounding for big x).
    out = jnp.where(odd_ref[...] != 0.0, jnp.cos(angle), jnp.sin(angle))
    o_ref[...] = out.astype(o_ref.dtype)


def _row_tile(n_rows, row_bytes):
    """Row-tile size: ~6 MiB per output tile, multiple of 8, >= 2 grid steps."""
    if n_rows <= 8:
        return n_rows  # single full-extent tile (legal: equals full array dim)
    # ~6 MiB per tile: 2 double-buffered tiles = 12 MiB < 16 MiB (v5e default
    # scoped VMEM), well under the 32 MiB defaults on v6e / v7x.
    target_bytes = 6 * 1024 * 1024
    ts = max(8, (target_bytes // max(row_bytes, 1)) // 8 * 8)
    # Keep at least 2 grid steps so dimension_semantics=("parallel",) can shard
    # the build across the 2 TensorCores on v7x.
    half = max(8, (((n_rows + 1) // 2) // 8) * 8)
    ts = min(ts, half)
    return min(ts, n_rows)


@functools.lru_cache(maxsize=None)
def _build_encoding(model_dim, maxlen, dtype_name="float32"):
    """Build the full (maxlen, model_dim) sinusoidal table with one Pallas call."""
    dtype = jnp.dtype(dtype_name)

    if model_dim % _LANES == 0 or _LANES % model_dim != 0:
        # Direct layout (maxlen, model_dim); lane-dense when model_dim % 128 == 0.
        lanes = model_dim
        pos_per_row = 1
        n_rows = maxlen
    else:
        # model_dim divides 128: pack 128 // model_dim positions per slab row so
        # every store is a full unmasked 128-lane store; reshape in the wrapper.
        lanes = _LANES
        pos_per_row = _LANES // model_dim
        n_rows = (maxlen + pos_per_row - 1) // pos_per_row

    # Per-lane constants, computed once outside the kernel as (1, L) rows.
    lane = jnp.arange(lanes)
    col = lane % model_dim
    even_col = (col - (col % 2)).astype(jnp.float32)
    inv_freq = jnp.exp(-math.log(10000.0) * even_col / float(model_dim))[None, :]
    odd = (col % 2).astype(jnp.float32)[None, :]
    posoff = (lane // model_dim).astype(jnp.float32)[None, :]

    ts = _row_tile(n_rows, lanes * dtype.itemsize)
    grid = ((n_rows + ts - 1) // ts,)

    cost = pl.CostEstimate(
        flops=6 * n_rows * lanes,
        transcendentals=2 * n_rows * lanes,
        bytes_accessed=n_rows * lanes * dtype.itemsize,
    )

    slab = pl.pallas_call(
        functools.partial(_pos_embedding_kernel, pos_per_row=pos_per_row),
        out_shape=jax.ShapeDtypeStruct((n_rows, lanes), dtype),
        grid=grid,
        in_specs=[
            pl.BlockSpec((1, lanes), lambda i: (0, 0)),
            pl.BlockSpec((1, lanes), lambda i: (0, 0)),
            pl.BlockSpec((1, lanes), lambda i: (0, 0)),
        ],
        out_specs=pl.BlockSpec((ts, lanes), lambda i: (i, 0)),
        compiler_params=pltpu.CompilerParams(dimension_semantics=("parallel",)),
        cost_estimate=cost,
    )(inv_freq.astype(jnp.float32), odd, posoff)

    if pos_per_row == 1:
        return slab
    # One-time layout fixup: row-major flatten, drop any padded tail positions.
    total = maxlen * model_dim
    return slab.reshape(-1)[:total].reshape(maxlen, model_dim)


@functools.lru_cache(maxsize=None)
def _encoding_prefix(model_dim, maxlen, seq_len, dtype_name="float32"):
    # Cache the sliced prefix per seq_len so steady-state forward() never
    # re-copies the table.  (lru_cache pins these device arrays for the
    # process lifetime, same as the PyTorch module holding its buffer.)
    enc = _build_encoding(model_dim, maxlen, dtype_name)
    if seq_len == maxlen:
        return enc
    return enc[:seq_len, :]


def position_embedding(x, model_dim, maxlen, dtype=jnp.float32):
    """Mirrors PositionEmbedding.forward: returns encoding[:seq_len, :].

    x: (batch, seq_len, ...) -- only the static x.shape[1] is used.
    """
    seq_len = x.shape[1]
    assert seq_len <= maxlen, "sequence length exceeds maxlen"
    return _encoding_prefix(model_dim, maxlen, seq_len, jnp.dtype(dtype).name)


def _reference(seq_len, model_dim):
    pos = jnp.arange(seq_len, dtype=jnp.float32)[:, None]
    _2i = jnp.arange(0, model_dim, 2, dtype=jnp.float32)
    enc = jnp.zeros((seq_len, model_dim), dtype=jnp.float32)
    enc = enc.at[:, 0::2].set(jnp.sin(pos / 10000.0 ** (_2i / model_dim)))
    enc = enc.at[:, 1::2].set(jnp.cos(pos / 10000.0 ** (_2i / model_dim)))
    return enc


if __name__ == "__main__":
    # Small config (lane-packed path: model_dim=32 -> 4 positions per 128-lane row).
    model_dim = 32
    maxlen = 16
    batch, seq_len = 2, 8

    key = jax.random.PRNGKey(0)
    x = jax.random.normal(key, (batch, seq_len, model_dim), dtype=jnp.float32)

    out = position_embedding(x, model_dim=model_dim, maxlen=maxlen)
    out = jax.block_until_ready(out)

    ref = _reference(seq_len, model_dim)
    assert out.shape == (seq_len, model_dim)
    assert out.dtype == jnp.float32
    assert jnp.allclose(out, ref, atol=1e-5, rtol=1e-5)

    # Mid config: packed path with a real multi-step ("parallel") grid.
    mid_dim, mid_maxlen = 64, 512
    xm = jnp.zeros((1, 300, mid_dim), dtype=jnp.float32)
    out_mid = jax.block_until_ready(position_embedding(xm, mid_dim, mid_maxlen))
    assert jnp.allclose(out_mid, _reference(300, mid_dim), atol=1e-4, rtol=1e-5)

    # Larger config: direct lane-dense path (model_dim % 128 == 0), 2-step grid.
    # Tolerance note: both kernel and reference compute sin/cos of f32 angles up
    # to ~2000; a 1-ulp difference in the angle (mul-by-inv-freq vs divide) is
    # ~1.2e-4 there, so 5e-4 absolute tolerance is the honest bound.
    big_dim, big_maxlen = 256, 2048
    xb = jnp.zeros((1, 777, big_dim), dtype=jnp.float32)
    out_big = jax.block_until_ready(position_embedding(xb, big_dim, big_maxlen))
    assert jnp.allclose(out_big, _reference(777, big_dim), atol=5e-4, rtol=1e-5)

    print("KERNEL_OK")
</pallas_src>

<mosaic_0001>
module attributes {stable_mosaic.version = 11 : i64} {
  func.func @_pos_embedding_kernel(%arg0: i32, %arg1: memref<1x128xf32, #tpu.memory_space<vmem>>, %arg2: memref<1x128xf32, #tpu.memory_space<vmem>>, %arg3: memref<1x128xf32, #tpu.memory_space<vmem>>, %arg4: memref<4x128xf32, #tpu.memory_space<vmem>>) attributes {dimension_semantics = [#tpu.dimension_semantics<parallel>], iteration_bounds = array<i64: 1>, scalar_prefetch = 0 : i64, scratch_operands = 0 : i64, tpu.core_type = #tpu.core_type<tc>, window_params = [{pipeline_mode = #tpu.pipeline_mode<synchronous>, transform_indices = @transform_0, window_bounds = array<i64: 1, 128>}, {pipeline_mode = #tpu.pipeline_mode<synchronous>, transform_indices = @transform_1, window_bounds = array<i64: 1, 128>}, {pipeline_mode = #tpu.pipeline_mode<synchronous>, transform_indices = @transform_2, window_bounds = array<i64: 1, 128>}, {transform_indices = @transform_3, window_bounds = array<i64: 4, 128>}]} {
    %c4_i32 = arith.constant 4 : i32
    %0 = arith.muli %arg0, %c4_i32 : i32
    %1 = arith.sitofp %0 : i32 to f32
    %2 = tpu.iota {dimensions = array<i32: 0>} : vector<4x128xi32>
    %3 = arith.sitofp %2 : vector<4x128xi32> to vector<4x128xf32>
    %4 = vector.broadcast %1 : f32 to vector<4x128xf32>
    %5 = arith.addf %3, %4 : vector<4x128xf32>
    %cst = arith.constant 4.000000e+00 : f32
    %6 = vector.broadcast %cst : f32 to vector<4x128xf32>
    %7 = arith.mulf %5, %6 : vector<4x128xf32>
    %c0 = arith.constant 0 : index
    %c0_0 = arith.constant 0 : index
    %8 = vector.load %arg3[%c0, %c0_0] : memref<1x128xf32, #tpu.memory_space<vmem>>, vector<1x128xf32>
    %9 = vector.broadcast %8 : vector<1x128xf32> to vector<4x128xf32>
    %10 = arith.addf %7, %9 : vector<4x128xf32>
    %c0_1 = arith.constant 0 : index
    %c0_2 = arith.constant 0 : index
    %11 = vector.load %arg1[%c0_1, %c0_2] : memref<1x128xf32, #tpu.memory_space<vmem>>, vector<1x128xf32>
    %12 = vector.broadcast %11 : vector<1x128xf32> to vector<4x128xf32>
    %13 = arith.mulf %10, %12 : vector<4x128xf32>
    %c0_3 = arith.constant 0 : index
    %c0_4 = arith.constant 0 : index
    %14 = vector.load %arg2[%c0_3, %c0_4] : memref<1x128xf32, #tpu.memory_space<vmem>>, vector<1x128xf32>
    %cst_5 = arith.constant 0.000000e+00 : f32
    %15 = vector.broadcast %cst_5 : f32 to vector<1x128xf32>
    %16 = arith.cmpf one, %14, %15 : vector<1x128xf32>
    %17 = math.cos %13 : vector<4x128xf32>
    %18 = math.sin %13 : vector<4x128xf32>
    %19 = vector.shape_cast %16 : vector<1x128xi1> to vector<1x128xi1>
    %20 = vector.broadcast %19 : vector<1x128xi1> to vector<4x128xi1>
    %21 = arith.select %20, %17, %18 : vector<4x128xi1>, vector<4x128xf32>
    %c0_6 = arith.constant 0 : index
    %c0_7 = arith.constant 0 : index
    %22 = vector.load %arg4[%c0_6, %c0_7] : memref<4x128xf32, #tpu.memory_space<vmem>>, vector<4x128xf32>
    tpu.vector_store %arg4[%c0_6, %c0_7], %21 {strides = array<i32>} : memref<4x128xf32, #tpu.memory_space<vmem>>, vector<4x128xf32>,
    return
  }
  func.func @transform_0(%arg0: i32) -> (i32, i32) {
    %c0_i32 = arith.constant 0 : i32
    %c0_i32_0 = arith.constant 0 : i32
    %c0_i32_1 = arith.constant 0 : i32
    return %c0_i32, %c0_i32_0 : i32, i32
  }
  func.func @transform_1(%arg0: i32) -> (i32, i32) {
    %c0_i32 = arith.constant 0 : i32
    %c0_i32_0 = arith.constant 0 : i32
    %c0_i32_1 = arith.constant 0 : i32
    return %c0_i32, %c0_i32_0 : i32, i32
  }
  func.func @transform_2(%arg0: i32) -> (i32, i32) {
    %c0_i32 = arith.constant 0 : i32
    %c0_i32_0 = arith.constant 0 : i32
    %c0_i32_1 = arith.constant 0 : i32
    return %c0_i32, %c0_i32_0 : i32, i32
  }
  func.func @transform_3(%arg0: i32) -> (i32, i32) {
    %c0_i32 = arith.constant 0 : i32
    %c0_i32_0 = arith.constant 0 : i32
    return %arg0, %c0_i32 : i32, i32
  }
}

</mosaic_0001>

<llo_original>
// kernel: tpu_custom_call.1
$region0: #{tpu_custom_call.1}
  #allocation0 [shape = 'u32[]', space=smem, size = 0x4, offset = 0x4, fixed_abs, tag = 'smem constant byte address 0x4 - core index']
  #allocation1 [shape = 'u32[144,128]{1,0:T(1,128)}', space=vmem, size = 0x12000, scoped, tag = 'internal scratch']
  %s0 = inlined_call_operand.hbm [shape: f32[1,128], index: 0, kind: input, shape index: {}]
  %s1 = inlined_call_operand.vmem [shape: f32[1,128], index: 1, kind: input, shape index: {}]
  %s2 = inlined_call_operand.vmem [shape: f32[1,128], index: 2, kind: input, shape index: {}]
  %s3 = inlined_call_operand.hbm [shape: f32[4,128], index: 3, kind: output, shape index: {}]
  %s4 = sld [smem:[#allocation0]]
  $region26: #{tpu_custom_call.1} parent=0
    _
  %s6 = ssub.s32 1, %s4
  %s7 = scalar_select 0, %s6, %s4
  $region1: #{tpu_custom_call.1} parent=0
    #allocation2 [shape = 'u8[512]{0}', space=vmem, size = 0x400, scoped, tag = 'input window, operand 0, single buffered']
    #allocation3 [shape = 's32[1]{0}', space=sflag, size = 0x4, scoped, tag = 'scoped memory for tpu_custom_call.1']
    #allocation4 [shape = 's32[1]{0}', space=sflag, size = 0x4, scoped, tag = 'scoped memory for tpu_custom_call.1']
    #allocation5 [shape = 'u8[2048]{0}', space=vmem, size = 0x800, scoped, tag = 'output window, operand 0, single buffered']
    %8 = vsyncpa [#allocation3], 0
    %9 = vsyncpa [#allocation4], 0
    // Predicated region
    $region2: #{tpu_custom_call.1} parent=1 // pred_check
      _
    $region3: #{tpu_custom_call.1} parent=1 // pred_check_branch
      %11 = sbr.rel (0) target = $region5
    $region4: #{tpu_custom_call.1} parent=1 // pred_region
      %s13 = ssub.s32 16, 16
      %14 = vsyncadd [#allocation3], %s13
      %s16 = sshll.u32 [#allocation2], 4
      %s17 = int_to_ptr.vmem [resolvable:$true] %s16
      %19 = dma.hbm_to_vmem [thread:$0]  %s0, 16, %s17, [#allocation3]
    $region5: #{tpu_custom_call.1} parent=1 // pred_fallthru
      _
    // Predicated region
    $region6: #{tpu_custom_call.1} parent=1 // pred_check
      _
    $region7: #{tpu_custom_call.1} parent=1 // pred_check_branch
      %21 = sbr.rel (0) target = $region9
    $region8: #{tpu_custom_call.1} parent=1 // pred_region
      _
    $region9: #{tpu_custom_call.1} parent=1 // pred_fallthru
      _
    // Predicated region
    $region10: #{tpu_custom_call.1} parent=1 // pred_check
      _
    $region11: #{tpu_custom_call.1} parent=1 // pred_check_branch
      %23 = sbr.rel (0) target = $region13
    $region12: #{tpu_custom_call.1} parent=1 // pred_region
      _
    $region13: #{tpu_custom_call.1} parent=1 // pred_fallthru
      _
    // Predicated region
    $region14: #{tpu_custom_call.1} parent=1 // pred_check
      _
    $region15: #{tpu_custom_call.1} parent=1 // pred_check_branch
      %25 = sbr.rel (0) target = $region17
    $region16: #{tpu_custom_call.1} parent=1 // pred_region
      %26 = dma.done [#allocation3], 16
    $region17: #{tpu_custom_call.1} parent=1 // pred_fallthru
      _
    %s27 = smul.u32 0, 4
    %s28 = scvt.s32.f32 %s27
    %v29 = vlaneseq
    %v30 = vshrl.u32 %v29, 7
    %v31 = vcvt.s32.f32 %v30
    %v32 = vstv %s28
    %v33 = vadd.f32 %v31, %v32
    %v34 = vmul.f32 %v33, 4.0
    %v35 = vld [vmem:[%s2] sm:$0x1]
    %v37 = vlaneseq
    %v38 = vshrl.u32 %v37, 7
    %v39 = vsub.s32 0, %v38
    %v40 = vrot.slane %v35, %v39
    %v42 = vadd.f32 %v34, %v40
    %v43 = vld [vmem:[#allocation2] sm:$0x1]
    %v45 = vlaneseq
    %v46 = vshrl.u32 %v45, 7
    %v47 = vsub.s32 0, %v46
    %v48 = vrot.slane %v43, %v47
    %v50 = vmul.f32 %v42, %v48
    %v51 = vld [vmem:[%s1] sm:$0x1]
    %vm52 = vcmp.ne.f32.partialorder %v51, 0.0
    %v53 = vand.u32 2147483647, %v50
    %vm54 = vcmp.le.f32.partialorder %v53, 0.7853982
    %vm55 = vcmp.lt.s32.totalorder %v50, 0
    %v56 = vand.u32 %v50, 2139095040
    %v57 = vshrl.u32 %v56, 23
    %v58 = vsub.s32 %v57, 127
    %v59 = vand.u32 2147483647, %v50
    %v60 = vand.u32 %v59, 8388607
    %v61 = vor.u32 %v60, 8388608
    %v62 = vsub.s32 0, %v61
    %v63 = vadd.s32 %v58, 1
    %vm64 = vcmp.gt.s32.totalorder %v63, 0
    %v65 = vsel %vm64, %v63, 0
    %v66 = vshrl.u32 %v65, 5
    %v67 = vand.u32 %v65, 31
    %v68 = vsub.s32 32, %v67
    %v69 = vshrl.u32 683565275, %v68
    %v70 = vshll.u32 683565275, %v67
    %v71 = vshrl.u32 2475754826, %v68
    %v72 = vor.u32 %v70, %v71
    %v73 = vshll.u32 2475754826, %v67
    %v74 = vshrl.u32 2131351028, %v68
    %v75 = vor.u32 %v73, %v74
    %v76 = vshll.u32 2131351028, %v67
    %v77 = vshrl.u32 2102212464, %v68
    %v78 = vor.u32 %v76, %v77
    %v79 = vshll.u32 2102212464, %v67
    %v80 = vshrl.u32 920167782, %v68
    %v81 = vor.u32 %v79, %v80
    %v82 = vshll.u32 920167782, %v67
    %v83 = vshrl.u32 1326507024, %v68
    %v84 = vor.u32 %v82, %v83
    %vm85 = vcmp.lt.s32.totalorder %v66, 1
    %vm86 = vcmp.lt.s32.totalorder %v66, 2
    %vm87 = vcmp.lt.s32.totalorder %v66, 3
    %vm88 = vcmp.lt.s32.totalorder %v66, 4
    %v89 = vsel %vm85, %v69, %v72
    %v90 = vsel %vm88, %v78, 2102212464
    %v91 = vsel %vm87, %v75, %v90
    %v92 = vsel %vm86, %v89, %v91
    %v93 = vsel %vm85, %v72, %v75
    %v94 = vsel %vm88, %v81, 920167782
    %v95 = vsel %vm87, %v78, %v94
    %v96 = vsel %vm86, %v93, %v95
    %v97 = vsel %vm85, %v75, %v78
    %v98 = vsel %vm88, %v84, 1326507024
    %v99 = vsel %vm87, %v81, %v98
    %v100 = vsel %vm86, %v97, %v99
    %v101 = vshll.u32 %v61, 8
    %v102 = vmul.u32.u64.compose %v101, %v100
    %v103 = vextract.low.u32 %v102
    %v104 = vextract.high.u32 %v102
    %v105 = vmul.u32.u64.compose %v101, %v96
    %v106 = vextract.low.u32 %v105
    %v107 = vextract.high.u32 %v105
    %v108 = vmul.u32 %v101, %v92
    %v109 = vadd.s32 %v104, %v106
    %vm110 = vc.u32 %v104, %v106
    %v111 = vadd.s32 %v107, 1
    %v112 = vsel %vm110, %v111, %v107
    %v113 = vadd.s32 %v108, %v112
    %v114 = vadd.s32 %v113, 536870912
    %v115 = vshrl.u32 %v114, 30
    %v116 = vshll.u32 %v115, 30
    %v117 = vsub.s32 %v113, %v116
    %vm118 = vcmp.lt.s32.totalorder %v117, 0
    %v119 = vsub.s32 0, %v117
    %v120 = vsel %vm118, %v119, %v117
    %v121 = vclz %v120
    %v122 = vsub.s32 %v121, 2
    %vm123 = vcmp.gt.s32.totalorder 0, %v122
    %v124 = vsel %vm123, 0, %v122
    %v125 = vsub.s32 32, %v124
    %v126 = vshll.u32 %v117, %v124
    %v127 = vshrl.u32 %v109, %v125
    %v128 = vor.u32 %v126, %v127
    %v129 = vsub.s32 4294967266, %v124
    %v130 = vadd.s32 %v129, 127
    %v131 = vshll.u32 %v130, 23
    %v132 = vor.u32 4788187, %v131
    %v133 = vand.u32 2147483647, %v132
    %v135 = vcvt.s32.f32 %v128
    %v136 = vmul.f32 %v135, %v133
    %v137 = vxor.u32 %v136, 2147483648
    %v138 = vsel %vm55, %v137, %v136
    %v139 = vsub.s32 4, %v115
    %v140 = vsel %vm55, %v139, %v115
    %v141 = vsel %vm54, %v50, %v138
    %v142 = vsel %vm54, 0, %v140
    %v143 = vcosq.f32.pop %v141
    %v144 = vsinq.f32.pop %v141
    %vm145 = vweird.f32 %v50
    %v146 = vand.u32 %v142, 3
    %vm147 = vcmp.lt.s32.totalorder %v146, 2
    %vm148 = vcmp.eq.s32.totalorder %v146, 0
    %v149 = vxor.u32 %v144, 2147483648
    %v150 = vsel %vm148, %v143, %v149
    %vm151 = vcmp.eq.s32.totalorder %v146, 2
    %v152 = vxor.u32 %v143, 2147483648
    %v153 = vsel %vm151, %v152, %v144
    %v154 = vsel %vm147, %v150, %v153
    %v155 = vsel %vm145, nan, %v154
    %v156 = vand.u32 2147483647, %v50
    %vm157 = vcmp.le.f32.partialorder %v156, 0.7853982
    %vm158 = vcmp.lt.s32.totalorder %v50, 0
    %v159 = vand.u32 %v50, 2139095040
    %v160 = vshrl.u32 %v159, 23
    %v161 = vsub.s32 %v160, 127
    %v162 = vand.u32 2147483647, %v50
    %v163 = vand.u32 %v162, 8388607
    %v164 = vor.u32 %v163, 8388608
    %v165 = vsub.s32 0, %v164
    %v166 = vadd.s32 %v161, 1
    %vm167 = vcmp.gt.s32.totalorder %v166, 0
    %v168 = vsel %vm167, %v166, 0
    %v169 = vshrl.u32 %v168, 5
    %v170 = vand.u32 %v168, 31
    %v171 = vsub.s32 32, %v170
    %v172 = vshrl.u32 683565275, %v171
    %v173 = vshll.u32 683565275, %v170
    %v174 = vshrl.u32 2475754826, %v171
    %v175 = vor.u32 %v173, %v174
    %v176 = vshll.u32 2475754826, %v170
    %v177 = vshrl.u32 2131351028, %v171
    %v178 = vor.u32 %v176, %v177
    %v179 = vshll.u32 2131351028, %v170
    %v180 = vshrl.u32 2102212464, %v171
    %v181 = vor.u32 %v179, %v180
    %v182 = vshll.u32 2102212464, %v170
    %v183 = vshrl.u32 920167782, %v171
    %v184 = vor.u32 %v182, %v183
    %v185 = vshll.u32 920167782, %v170
    %v186 = vshrl.u32 1326507024, %v171
    %v187 = vor.u32 %v185, %v186
    %vm188 = vcmp.lt.s32.totalorder %v169, 1
    %vm189 = vcmp.lt.s32.totalorder %v169, 2
    %vm190 = vcmp.lt.s32.totalorder %v169, 3
    %vm191 = vcmp.lt.s32.totalorder %v169, 4
    %v192 = vsel %vm188, %v172, %v175
    %v193 = vsel %vm191, %v181, 2102212464
    %v194 = vsel %vm190, %v178, %v193
    %v195 = vsel %vm189, %v192, %v194
    %v196 = vsel %vm188, %v175, %v178
    %v197 = vsel %vm191, %v184, 920167782
    %v198 = vsel %vm190, %v181, %v197
    %v199 = vsel %vm189, %v196, %v198
    %v200 = vsel %vm188, %v178, %v181
    %v201 = vsel %vm191, %v187, 1326507024
    %v202 = vsel %vm190, %v184, %v201
    %v203 = vsel %vm189, %v200, %v202
    %v204 = vshll.u32 %v164, 8
    %v205 = vmul.u32.u64.compose %v204, %v203
    %v206 = vextract.low.u32 %v205
    %v207 = vextract.high.u32 %v205
    %v208 = vmul.u32.u64.compose %v204, %v199
    %v209 = vextract.low.u32 %v208
    %v210 = vextract.high.u32 %v208
    %v211 = vmul.u32 %v204, %v195
    %v212 = vadd.s32 %v207, %v209
    %vm213 = vc.u32 %v207, %v209
    %v214 = vadd.s32 %v210, 1
    %v215 = vsel %vm213, %v214, %v210
    %v216 = vadd.s32 %v211, %v215
    %v217 = vadd.s32 %v216, 536870912
    %v218 = vshrl.u32 %v217, 30
    %v219 = vshll.u32 %v218, 30
    %v220 = vsub.s32 %v216, %v219
    %vm221 = vcmp.lt.s32.totalorder %v220, 0
    %v222 = vsub.s32 0, %v220
    %v223 = vsel %vm221, %v222, %v220
    %v224 = vclz %v223
    %v225 = vsub.s32 %v224, 2
    %vm226 = vcmp.gt.s32.totalorder 0, %v225
    %v227 = vsel %vm226, 0, %v225
    %v228 = vsub.s32 32, %v227
    %v229 = vshll.u32 %v220, %v227
    %v230 = vshrl.u32 %v212, %v228
    %v231 = vor.u32 %v229, %v230
    %v232 = vsub.s32 4294967266, %v227
    %v233 = vadd.s32 %v232, 127
    %v234 = vshll.u32 %v233, 23
    %v235 = vor.u32 4788187, %v234
    %v236 = vand.u32 2147483647, %v235
    %v238 = vcvt.s32.f32 %v231
    %v239 = vmul.f32 %v238, %v236
    %v240 = vxor.u32 %v239, 2147483648
    %v241 = vsel %vm158, %v240, %v239
    %v242 = vsub.s32 4, %v218
    %v243 = vsel %vm158, %v242, %v218
    %v244 = vsel %vm157, %v50, %v241
    %v245 = vsel %vm157, 0, %v243
    %v246 = vcosq.f32.pop %v244
    %v247 = vsinq.f32.pop %v244
    %vm248 = vweird.f32 %v50
    %v249 = vadd.s32 %v245, 3
    %v250 = vand.u32 %v249, 3
    %vm251 = vcmp.lt.s32.totalorder %v250, 2
    %vm252 = vcmp.eq.s32.totalorder %v250, 0
    %v253 = vxor.u32 %v247, 2147483648
    %v254 = vsel %vm252, %v246, %v253
    %vm255 = vcmp.eq.s32.totalorder %v250, 2
    %v256 = vxor.u32 %v246, 2147483648
    %v257 = vsel %vm255, %v256, %v247
    %v258 = vsel %vm251, %v254, %v257
    %v259 = vsel %vm248, nan, %v258
    %v260 = vsel %vm52, 1, 0
    %v261 = vlaneseq
    %v262 = vshrl.u32 %v261, 7
    %v263 = vsub.s32 0, %v262
    %v264 = vrot.slane %v260, %v263
    %vm265 = vcmp.eq.s32.totalorder %v264, 1
    %v266 = vsel %vm265, %v155, %v259
    %267 = vst [vmem:[#allocation5] sm:$0xf] %v266
    // Predicated region
    $region18: #{tpu_custom_call.1} parent=1 // pred_check
      _
    $region19: #{tpu_custom_call.1} parent=1 // pred_check_branch
      %269 = sbr.rel (0) target = $region21
    $region20: #{tpu_custom_call.1} parent=1 // pred_region
      %s271 = ssub.s32 64, 64
      %272 = vsyncadd [#allocation4], %s271
      %s274 = sshll.u32 [#allocation5], 4
      %s275 = int_to_ptr.vmem [resolvable:$true] %s274
      %277 = dma.vmem_to_hbm [thread:$0]  %s275, 64, %s3, [#allocation4]
    $region21: #{tpu_custom_call.1} parent=1 // pred_fallthru
      _
    // Predicated region
    $region22: #{tpu_custom_call.1} parent=1 // pred_check
      _
    $region23: #{tpu_custom_call.1} parent=1 // pred_check_branch
      %279 = sbr.rel (0) target = $region25
    $region24: #{tpu_custom_call.1} parent=1 // pred_region
      %280 = dma.done [#allocation4], 64
    $region25: #{tpu_custom_call.1} parent=1 // pred_fallthru
      _
    %281 = vsyncpa [#allocation3], 1
    %282 = vsyncpa [#allocation4], 1

</llo_original>
